<compile_context>
chip_gen: v6e
topology: v6e:2x2x1
jax: 0.10.0
libtpu: 0.0.40
codegen_flags: <defaults>
</compile_context>

<pallas_src>
import jax
import jax.numpy as jnp
from jax.experimental import pallas as pl
from jax.experimental.pallas import tpu as pltpu


def _dma_copy_kernel(src_hbm, dst_hbm, sem):
    # Single whole-array HBM->HBM async copy; no VMEM staging, no grid steps.
    cp = pltpu.make_async_copy(src_hbm, dst_hbm, sem)
    cp.start()
    cp.wait()


def transform_features_simple(img_feat, txt_feat, proto_params=None):
    """Pallas implementation of TransformFeaturesSimple.forward.

    proto_params mirrors the PyTorch module's ProtoModule parameter, which is
    not used in the forward pass.
    """
    del proto_params  # unused in forward (matches the PyTorch module)
    bs, seq, em = txt_feat.shape
    flat = seq * em

    # Free (metadata-only) contiguous reshape outside the kernel: the kernel
    # input already carries the final output shape, so no post-kernel reshape
    # is needed either.
    txt_reshaped = txt_feat.reshape(1, bs, flat)

    # NOTE: the truly optimal path is `return img_feat, txt_reshaped` (no
    # kernel at all).  The kernel below is the cheapest legal Pallas form:
    # one HBM->HBM DMA of the whole array.
    txt_out = pl.pallas_call(
        _dma_copy_kernel,
        out_shape=jax.ShapeDtypeStruct((1, bs, flat), txt_reshaped.dtype),
        in_specs=[pl.BlockSpec(memory_space=pl.ANY)],
        out_specs=pl.BlockSpec(memory_space=pl.ANY),
        scratch_shapes=[pltpu.SemaphoreType.DMA],
    )(txt_reshaped)

    # img_feat: identity -> pass straight through (zero HBM traffic).
    return img_feat, txt_out


def make_proto_params(proto_count, txt_dim, key):
    # ProtoModule(opt.proto_count, opt.txt_dim): prototype bank, unused in
    # the forward pass; kept only for parity with the PyTorch module.
    return jax.random.normal(key, (proto_count, txt_dim), dtype=jnp.float32)


if __name__ == "__main__":
    key = jax.random.PRNGKey(0)
    k_img, k_txt, k_proto = jax.random.split(key, 3)

    bs, seq, em_dim = 2, 8, 32     # txt_feat: (bs, seq_length, em_dim)
    img_dim = 64                   # img_feat: (bs, img_dim)

    img_feat = jax.random.normal(k_img, (bs, img_dim), dtype=jnp.float32)
    txt_feat = jax.random.normal(k_txt, (bs, seq, em_dim), dtype=jnp.float32)
    proto_params = make_proto_params(proto_count=10, txt_dim=em_dim, key=k_proto)

    img_out, txt_out = transform_features_simple(img_feat, txt_feat, proto_params)
    jax.block_until_ready((img_out, txt_out))

    # Verify against the reference semantics (identity + reshape).
    ref_img = img_feat
    ref_txt = txt_feat.reshape(1, bs, -1)
    assert img_out.shape == ref_img.shape and txt_out.shape == ref_txt.shape
    assert jnp.array_equal(img_out, ref_img)
    assert jnp.array_equal(txt_out, ref_txt)

    print("KERNEL_OK")
</pallas_src>

<mosaic_0001>
module attributes {stable_mosaic.version = 11 : i64} {
  func.func @_dma_copy_kernel(%arg0: memref<1x2x256xf32, #tpu.memory_space<any>>, %arg1: memref<1x2x256xf32, #tpu.memory_space<any>>, %arg2: memref<!tpu.dma_semaphore, #tpu.memory_space<semaphore_mem>>) attributes {dimension_semantics = [], scalar_prefetch = 0 : i64, scratch_operands = 1 : i64, tpu.core_type = #tpu.core_type<tc>} {
    tpu.enqueue_dma source(%arg0 : memref<1x2x256xf32, #tpu.memory_space<any>>) target(%arg1 : memref<1x2x256xf32, #tpu.memory_space<any>>) target_semaphore(%arg2 : memref<!tpu.dma_semaphore, #tpu.memory_space<semaphore_mem>>)
    tpu.wait_dma2 semaphore(%arg2 : memref<!tpu.dma_semaphore, #tpu.memory_space<semaphore_mem>>) src(%arg0 : memref<1x2x256xf32, #tpu.memory_space<any>>) dst(%arg1 : memref<1x2x256xf32, #tpu.memory_space<any>>)
    return
  }
}

</mosaic_0001>

<llo_original>
// kernel: tpu_custom_call.1
$region0: #{tpu_custom_call.1}
  #allocation0 [shape = 'u32[]', space=smem, size = 0x4, offset = 0x4, fixed_abs, tag = 'smem constant byte address 0x4 - core index']
  #allocation1 [shape = 'u32[144,128]{1,0:T(1,128)}', space=vmem, size = 0x12000, scoped, tag = 'internal scratch']
  #allocation2 [shape = 's32[1]{0}', space=sflag, size = 0x4, scoped, tag = 'scratch operand']
  #allocation3 [shape = 's32[]', space=sflag, size = 0x4, offset = 0, fixed_abs, tag = 'sflag constant byte address 0x0 - dummy sync flag']
  #allocation4 [shape = 'u32[0]{0}', space=smem, size = 0, offset = 0, fixed_abs, tag = 'smem constant byte address 0x0 - null']
  %s0 = inlined_call_operand.hbm [shape: f32[1,2,256], index: 0, kind: input, shape index: {}]
  %s1 = inlined_call_operand.hbm [shape: f32[1,2,256], index: 1, kind: output, shape index: {}]
  %s2 = sld [smem:[#allocation0]]
  $region2: #{tpu_custom_call.1} parent=0
    _
  %s4 = ssub.s32 1, %s2
  %s5 = scalar_select 0, %s4, %s2
  %s7 = sshll.u32 1, 14
  %s8 = sxor.u32 4294967295, %s7
  %12 = dma.general %s0, 64, %s1, [#allocation2], 131072, [#allocation4], 0, 0
  %s13 = smul.u32 2, 1
  %s14 = smul.u32 %s13, 1
  %s15 = smul.u32 %s14, 2
  %s16 = sshll.u32 %s15, 4
  %17 = dma.done [#allocation2], %s16
  %18 = vsyncmov [#allocation2]
  %s19 = vpop.sfrf %18
  %p20 = scmp.eq.s32.totalorder %s19, 0
  %p21 = pneg %p20
  %23 = shalt.err (%p21)

</llo_original>
